<compile_context>
chip_gen: v7x
topology: tpu7x:2x2x1
jax: 0.10.0
libtpu: 0.0.40
codegen_flags: <defaults>
</compile_context>

<pallas_src>
import functools

import jax
import jax.numpy as jnp
from jax.experimental import pallas as pl
from jax.experimental.pallas import tpu as pltpu


def _vmem_capacity_bytes():
    """Physical VMEM of the local TPU generation (conservative fallback)."""
    try:
        cap = getattr(pltpu.get_tpu_info(), "vmem_capacity_bytes", None)
        if cap:
            return int(cap)
    except Exception:
        pass
    return 64 * 1024 * 1024  # v7x-sized fallback: always safe


def _dist_stats_kernel(ys_ref, yt_ref, out_ref, *,
                       n_cols, tile_s, total_s, eps, has_tail):
    """One (C, TILE_S) tile -> (C, 8) partial statistics.

    Output block columns (qs = softmax(y_s) - 1/C, qt = softmax(y_t) - 1/C):
      0: sum_pix qs        1: sum_pix qt
      2: sum_pix qs^2      3: sum_pix qt^2
      4: sum_pix qs*qt     5: per-tile sum of per-pixel Pearson (replicated)
      6,7: zero (unused)
    Classes live on the sublane axis, pixels on the lane axis, so per-pixel
    (inter-class) reductions are cheap cross-vreg adds and NCHW inputs need no
    wrapper transpose.
    """
    s_idx = pl.program_id(1)
    inv_c = 1.0 / float(n_cols)

    def compute(scrub):
        xs = ys_ref[...]
        xt = yt_ref[...]
        if scrub:
            # Only the last spatial tile can contain padded (garbage) pixels;
            # zero them so their softmax becomes exactly 1/C and every q-based
            # statistic (and the per-pixel Pearson) vanishes for those lanes.
            lane = jax.lax.broadcasted_iota(jnp.int32, (1, tile_s), 1)
            valid = total_s - s_idx * tile_s
            keep = lane < valid
            xs = jnp.where(keep, xs, jnp.zeros_like(xs))
            xt = jnp.where(keep, xt, jnp.zeros_like(xt))
        xs = xs.astype(jnp.float32)
        xt = xt.astype(jnp.float32)

        def softmax_over_classes(x):            # softmax over axis 0 (classes)
            x = x - jnp.max(x, axis=0, keepdims=True)
            e = jnp.exp(x)
            # one reciprocal per pixel + broadcast multiply (no per-elem divide)
            return e * (1.0 / jnp.sum(e, axis=0, keepdims=True))

        # Shift by the exact softmax mean 1/C: centers both the per-pixel
        # (inter) statistics and the streamed per-class (intra) statistics.
        qs = softmax_over_classes(xs) - inv_c
        qt = softmax_over_classes(xt) - inv_c
        qs2 = qs * qs
        qt2 = qt * qt
        qst = qs * qt

        # --- inter-class: per-pixel Pearson over classes (sublane reduces) ---
        num = jnp.sum(qst, axis=0, keepdims=True)
        ssx = jnp.sum(qs2, axis=0, keepdims=True)
        ssy = jnp.sum(qt2, axis=0, keepdims=True)
        r_pix = num / (jnp.sqrt(ssx * ssy) + eps)     # padded pixels -> 0/eps = 0
        inter_part = jnp.sum(r_pix)

        # --- intra-class: per-class partial sums over pixels (lane reduces) --
        out_ref[:, 0:1] = jnp.sum(qs, axis=1, keepdims=True)
        out_ref[:, 1:2] = jnp.sum(qt, axis=1, keepdims=True)
        out_ref[:, 2:3] = jnp.sum(qs2, axis=1, keepdims=True)
        out_ref[:, 3:4] = jnp.sum(qt2, axis=1, keepdims=True)
        out_ref[:, 4:5] = jnp.sum(qst, axis=1, keepdims=True)
        out_ref[:, 5:6] = jnp.zeros((n_cols, 1), jnp.float32) + inter_part
        out_ref[:, 6:8] = jnp.zeros((n_cols, 2), jnp.float32)

    if has_tail:
        last = pl.num_programs(1) - 1
        pl.when(s_idx == last)(lambda: compute(True))    # masked tail tile
        pl.when(s_idx != last)(lambda: compute(False))   # mask-free fast path
    else:
        compute(False)                                   # static fast path


def dist_loss(y_s, y_t, beta=1.0, gamma=1.0, eps=1e-8, tile_s=None):
    """JAX/Pallas equivalent of DIST.forward(y_s, y_t)."""
    assert y_s.ndim in (2, 4)
    assert y_s.shape == y_t.shape

    if y_s.ndim == 4:
        # NCHW stays in its native layout: both DIST terms are invariant to the
        # pixel (row) ordering, so torch's transpose(1,3)+reshape is not needed.
        B, C, H, W = y_s.shape
        ys = y_s.reshape(B, C, H * W)
        yt = y_t.reshape(B, C, H * W)
    else:
        # TODO(synk): add a rows-first kernel variant so very large 2-D (N, C)
        # inputs (huge N or huge C) avoid this transpose copy; for batch-sized
        # N the copy is negligible.
        N, C = y_s.shape
        B = 1
        ys = y_s.T.reshape(1, C, N)
        yt = y_t.T.reshape(1, C, N)

    _, C, S = ys.shape
    n_rows = B * S                                    # total Pearson sample count

    # Per-generation tile / scoped-VMEM budget (bigger tiles on 128-MiB parts).
    vmem_cap = _vmem_capacity_bytes()
    if vmem_cap >= 96 * (1 << 20):                    # v5e / v6e: 128 MiB VMEM
        f32_tile_budget = 4 * (1 << 20)
        vmem_limit = 96 * (1 << 20)
    else:                                             # v7x: 64 MiB (or unknown)
        f32_tile_budget = 2 * (1 << 20)
        vmem_limit = 48 * (1 << 20)

    if tile_s is None:
        tile_s = min(f32_tile_budget // (4 * max(C, 1)), 65536)
    if tile_s >= S:
        tile_s = S                                    # full-dim block is legal
    else:
        tile_s = max(128, (tile_s // 128) * 128)      # lane-aligned tiles
        tile_s = min(tile_s, S)
    n_tiles = pl.cdiv(S, tile_s)
    has_tail = (S % tile_s) != 0

    kernel = functools.partial(
        _dist_stats_kernel, n_cols=C, tile_s=tile_s, total_s=S,
        eps=float(eps), has_tail=has_tail)

    partials = pl.pallas_call(
        kernel,
        out_shape=jax.ShapeDtypeStruct((B, n_tiles, C, 8), jnp.float32),
        grid_spec=pltpu.PrefetchScalarGridSpec(
            num_scalar_prefetch=0,
            grid=(B, n_tiles),
            in_specs=[pl.BlockSpec((None, C, tile_s), lambda b, s: (b, 0, s)),
                      pl.BlockSpec((None, C, tile_s), lambda b, s: (b, 0, s))],
            out_specs=pl.BlockSpec((None, None, C, 8),
                                   lambda b, s: (b, s, 0, 0))),
        compiler_params=pltpu.CompilerParams(
            dimension_semantics=("parallel", "parallel"),  # v7x: use both TCs
            vmem_limit_bytes=vmem_limit),
    )(ys, yt)                                         # native dtype; cast in-kernel

    # ---- tiny cross-tile reduction + Pearson finalize (plain JAX) -----------
    n = jnp.float32(n_rows)
    col = jnp.sum(partials[:, :, :, :5], axis=(0, 1))          # (C, 5)
    inter_sum = jnp.sum(partials[:, :, 0, 5])                  # scalar
    mu_s = col[:, 0] / n
    mu_t = col[:, 1] / n
    sxy = col[:, 4] - n * mu_s * mu_t
    sxx = jnp.maximum(col[:, 2] - n * mu_s * mu_s, 0.0)
    syy = jnp.maximum(col[:, 3] - n * mu_t * mu_t, 0.0)
    r_col = sxy / (jnp.sqrt(sxx) * jnp.sqrt(syy) + eps)
    intra_loss = 1.0 - jnp.mean(r_col)
    inter_loss = 1.0 - inter_sum / n
    return beta * inter_loss + gamma * intra_loss


def _dist_reference(y_s, y_t, beta=1.0, gamma=1.0, eps=1e-8):
    """Pure-JAX reference mirroring the PyTorch code path (for sanity check)."""
    if y_s.ndim == 4:
        C = y_s.shape[1]
        y_s = jnp.transpose(y_s, (0, 3, 2, 1)).reshape(-1, C)
        y_t = jnp.transpose(y_t, (0, 3, 2, 1)).reshape(-1, C)
    ps = jax.nn.softmax(y_s, axis=1)
    pt = jax.nn.softmax(y_t, axis=1)

    def pearson(x, y):
        x = x - x.mean(1, keepdims=True)
        y = y - y.mean(1, keepdims=True)
        return (x * y).sum(1) / (jnp.linalg.norm(x, axis=1) *
                                 jnp.linalg.norm(y, axis=1) + eps)

    inter = 1.0 - pearson(ps, pt).mean()
    intra = 1.0 - pearson(ps.T, pt.T).mean()
    return beta * inter + gamma * intra


if __name__ == "__main__":
    key = jax.random.PRNGKey(0)
    k1, k2, k3, k4 = jax.random.split(key, 4)

    # 4-D NCHW logits (batch=2, classes=4, spatial=16x16), like the PyTorch module.
    y_s4 = jax.random.normal(k1, (2, 4, 16, 16), dtype=jnp.float32)
    y_t4 = jax.random.normal(k2, (2, 4, 16, 16), dtype=jnp.float32)

    ref4 = jax.block_until_ready(_dist_reference(y_s4, y_t4))
    loss4_auto = jax.block_until_ready(dist_loss(y_s4, y_t4))              # 1 tile / batch
    loss4_tiled = jax.block_until_ready(dist_loss(y_s4, y_t4, tile_s=128)) # 2 tiles / batch
    assert jnp.isfinite(loss4_auto) and jnp.isfinite(loss4_tiled), "non-finite loss"
    assert abs(float(loss4_auto) - float(ref4)) < 2e-4, (float(loss4_auto), float(ref4))
    assert abs(float(loss4_tiled) - float(ref4)) < 2e-4, (float(loss4_tiled), float(ref4))

    # 2-D logits with N not a multiple of the tile -> exercises tail masking.
    y_s2 = jax.random.normal(k3, (200, 7), dtype=jnp.float32)
    y_t2 = jax.random.normal(k4, (200, 7), dtype=jnp.float32)
    ref2 = jax.block_until_ready(_dist_reference(y_s2, y_t2))
    loss2_auto = jax.block_until_ready(dist_loss(y_s2, y_t2))              # single tile
    loss2_tail = jax.block_until_ready(dist_loss(y_s2, y_t2, tile_s=128))  # 2 tiles + tail
    assert jnp.isfinite(loss2_auto) and jnp.isfinite(loss2_tail), "non-finite loss"
    assert abs(float(loss2_auto) - float(ref2)) < 2e-4, (float(loss2_auto), float(ref2))
    assert abs(float(loss2_tail) - float(ref2)) < 2e-4, (float(loss2_tail), float(ref2))

    print("KERNEL_OK")
</pallas_src>

<mosaic_0001>
module attributes {stable_mosaic.version = 11 : i64} {
  func.func @_dist_stats_kernel(%arg0: i32, %arg1: i32, %arg2: memref<1x4x256xf32, #tpu.memory_space<vmem>>, %arg3: memref<1x4x256xf32, #tpu.memory_space<vmem>>, %arg4: memref<1x1x4x8xf32, #tpu.memory_space<vmem>>) attributes {dimension_semantics = [#tpu.dimension_semantics<parallel>, #tpu.dimension_semantics<parallel>], iteration_bounds = array<i64: 2, 1>, scalar_prefetch = 0 : i64, scratch_operands = 0 : i64, tpu.core_type = #tpu.core_type<tc>, window_params = [{transform_indices = @transform_0, window_bounds = array<i64: 1, 4, 256>}, {transform_indices = @transform_1, window_bounds = array<i64: 1, 4, 256>}, {transform_indices = @transform_2, window_bounds = array<i64: 1, 1, 4, 8>}]} {
    %c0 = arith.constant 0 : index
    %c0_0 = arith.constant 0 : index
    %c0_1 = arith.constant 0 : index
    %0 = vector.load %arg2[%c0, %c0_0, %c0_1] : memref<1x4x256xf32, #tpu.memory_space<vmem>>, vector<1x4x256xf32>
    %1 = vector.shape_cast %0 : vector<1x4x256xf32> to vector<4x256xf32>
    %c0_2 = arith.constant 0 : index
    %c0_3 = arith.constant 0 : index
    %c0_4 = arith.constant 0 : index
    %2 = vector.load %arg3[%c0_2, %c0_3, %c0_4] : memref<1x4x256xf32, #tpu.memory_space<vmem>>, vector<1x4x256xf32>
    %3 = vector.shape_cast %2 : vector<1x4x256xf32> to vector<4x256xf32>
    %cst = arith.constant dense<0xFF800000> : vector<256xf32>
    %4 = vector.multi_reduction <maximumf>, %1, %cst [0] : vector<4x256xf32> to vector<256xf32>
    %5 = vector.shape_cast %4 : vector<256xf32> to vector<1x256xf32>
    %6 = vector.broadcast %5 : vector<1x256xf32> to vector<4x256xf32>
    %7 = arith.subf %1, %6 : vector<4x256xf32>
    %8 = math.exp %7 : vector<4x256xf32>
    %cst_5 = arith.constant dense<0.000000e+00> : vector<256xf32>
    %9 = vector.multi_reduction <add>, %8, %cst_5 [0] : vector<4x256xf32> to vector<256xf32>
    %10 = vector.shape_cast %9 : vector<256xf32> to vector<1x256xf32>
    %cst_6 = arith.constant 1.000000e+00 : f32
    %11 = vector.broadcast %cst_6 : f32 to vector<1x256xf32>
    %12 = arith.divf %11, %10 : vector<1x256xf32>
    %13 = vector.broadcast %12 : vector<1x256xf32> to vector<4x256xf32>
    %14 = arith.mulf %8, %13 : vector<4x256xf32>
    %cst_7 = arith.constant 2.500000e-01 : f32
    %15 = vector.broadcast %cst_7 : f32 to vector<4x256xf32>
    %16 = arith.subf %14, %15 : vector<4x256xf32>
    %cst_8 = arith.constant dense<0xFF800000> : vector<256xf32>
    %17 = vector.multi_reduction <maximumf>, %3, %cst_8 [0] : vector<4x256xf32> to vector<256xf32>
    %18 = vector.shape_cast %17 : vector<256xf32> to vector<1x256xf32>
    %19 = vector.broadcast %18 : vector<1x256xf32> to vector<4x256xf32>
    %20 = arith.subf %3, %19 : vector<4x256xf32>
    %21 = math.exp %20 : vector<4x256xf32>
    %cst_9 = arith.constant dense<0.000000e+00> : vector<256xf32>
    %22 = vector.multi_reduction <add>, %21, %cst_9 [0] : vector<4x256xf32> to vector<256xf32>
    %23 = vector.shape_cast %22 : vector<256xf32> to vector<1x256xf32>
    %cst_10 = arith.constant 1.000000e+00 : f32
    %24 = vector.broadcast %cst_10 : f32 to vector<1x256xf32>
    %25 = arith.divf %24, %23 : vector<1x256xf32>
    %26 = vector.broadcast %25 : vector<1x256xf32> to vector<4x256xf32>
    %27 = arith.mulf %21, %26 : vector<4x256xf32>
    %cst_11 = arith.constant 2.500000e-01 : f32
    %28 = vector.broadcast %cst_11 : f32 to vector<4x256xf32>
    %29 = arith.subf %27, %28 : vector<4x256xf32>
    %30 = arith.mulf %16, %16 : vector<4x256xf32>
    %31 = arith.mulf %29, %29 : vector<4x256xf32>
    %32 = arith.mulf %16, %29 : vector<4x256xf32>
    %cst_12 = arith.constant dense<0.000000e+00> : vector<256xf32>
    %33 = vector.multi_reduction <add>, %32, %cst_12 [0] : vector<4x256xf32> to vector<256xf32>
    %34 = vector.shape_cast %33 : vector<256xf32> to vector<1x256xf32>
    %cst_13 = arith.constant dense<0.000000e+00> : vector<256xf32>
    %35 = vector.multi_reduction <add>, %30, %cst_13 [0] : vector<4x256xf32> to vector<256xf32>
    %36 = vector.shape_cast %35 : vector<256xf32> to vector<1x256xf32>
    %cst_14 = arith.constant dense<0.000000e+00> : vector<256xf32>
    %37 = vector.multi_reduction <add>, %31, %cst_14 [0] : vector<4x256xf32> to vector<256xf32>
    %38 = vector.shape_cast %37 : vector<256xf32> to vector<1x256xf32>
    %39 = arith.mulf %36, %38 : vector<1x256xf32>
    %40 = math.sqrt %39 : vector<1x256xf32>
    %cst_15 = arith.constant 9.99999993E-9 : f32
    %41 = vector.broadcast %cst_15 : f32 to vector<1x256xf32>
    %42 = arith.addf %40, %41 : vector<1x256xf32>
    %43 = arith.divf %34, %42 : vector<1x256xf32>
    %44 = vector.shape_cast %43 : vector<1x256xf32> to vector<1x1x256xf32>
    %cst_16 = arith.constant dense<0.000000e+00> : vector<1xf32>
    %45 = vector.multi_reduction <add>, %44, %cst_16 [1, 2] : vector<1x1x256xf32> to vector<1xf32>
    %46 = vector.shape_cast %45 : vector<1xf32> to vector<1x1x1xf32>
    %47 = vector.extract %46[0, 0, 0] : f32 from vector<1x1x1xf32>
    %cst_17 = arith.constant dense<0.000000e+00> : vector<4xf32>
    %48 = vector.multi_reduction <add>, %16, %cst_17 [1] : vector<4x256xf32> to vector<4xf32>
    %49 = vector.shape_cast %48 : vector<4xf32> to vector<4x1xf32>
    %c0_18 = arith.constant 0 : index
    %c0_19 = arith.constant 0 : index
    %c0_20 = arith.constant 0 : index
    %c0_21 = arith.constant 0 : index
    %50 = vector.load %arg4[%c0_18, %c0_19, %c0_20, %c0_21] : memref<1x1x4x8xf32, #tpu.memory_space<vmem>>, vector<1x1x4x1xf32>
    %51 = vector.shape_cast %50 : vector<1x1x4x1xf32> to vector<4x1xf32>
    %52 = vector.shape_cast %49 : vector<4x1xf32> to vector<1x1x4x1xf32>
    tpu.vector_store %arg4[%c0_18, %c0_19, %c0_20, %c0_21], %52 {strides = array<i32>} : memref<1x1x4x8xf32, #tpu.memory_space<vmem>>, vector<1x1x4x1xf32>,
    %cst_22 = arith.constant dense<0.000000e+00> : vector<4xf32>
    %53 = vector.multi_reduction <add>, %29, %cst_22 [1] : vector<4x256xf32> to vector<4xf32>
    %54 = vector.shape_cast %53 : vector<4xf32> to vector<4x1xf32>
    %c0_23 = arith.constant 0 : index
    %c0_24 = arith.constant 0 : index
    %c0_25 = arith.constant 0 : index
    %c1 = arith.constant 1 : index
    %55 = vector.load %arg4[%c0_23, %c0_24, %c0_25, %c1] : memref<1x1x4x8xf32, #tpu.memory_space<vmem>>, vector<1x1x4x1xf32>
    %56 = vector.shape_cast %55 : vector<1x1x4x1xf32> to vector<4x1xf32>
    %57 = vector.shape_cast %54 : vector<4x1xf32> to vector<1x1x4x1xf32>
    tpu.vector_store %arg4[%c0_23, %c0_24, %c0_25, %c1], %57 {strides = array<i32>} : memref<1x1x4x8xf32, #tpu.memory_space<vmem>>, vector<1x1x4x1xf32>,
    %cst_26 = arith.constant dense<0.000000e+00> : vector<4xf32>
    %58 = vector.multi_reduction <add>, %30, %cst_26 [1] : vector<4x256xf32> to vector<4xf32>
    %59 = vector.shape_cast %58 : vector<4xf32> to vector<4x1xf32>
    %c0_27 = arith.constant 0 : index
    %c0_28 = arith.constant 0 : index
    %c0_29 = arith.constant 0 : index
    %c2 = arith.constant 2 : index
    %60 = vector.load %arg4[%c0_27, %c0_28, %c0_29, %c2] : memref<1x1x4x8xf32, #tpu.memory_space<vmem>>, vector<1x1x4x1xf32>
    %61 = vector.shape_cast %60 : vector<1x1x4x1xf32> to vector<4x1xf32>
    %62 = vector.shape_cast %59 : vector<4x1xf32> to vector<1x1x4x1xf32>
    tpu.vector_store %arg4[%c0_27, %c0_28, %c0_29, %c2], %62 {strides = array<i32>} : memref<1x1x4x8xf32, #tpu.memory_space<vmem>>, vector<1x1x4x1xf32>,
    %cst_30 = arith.constant dense<0.000000e+00> : vector<4xf32>
    %63 = vector.multi_reduction <add>, %31, %cst_30 [1] : vector<4x256xf32> to vector<4xf32>
    %64 = vector.shape_cast %63 : vector<4xf32> to vector<4x1xf32>
    %c0_31 = arith.constant 0 : index
    %c0_32 = arith.constant 0 : index
    %c0_33 = arith.constant 0 : index
    %c3 = arith.constant 3 : index
    %65 = vector.load %arg4[%c0_31, %c0_32, %c0_33, %c3] : memref<1x1x4x8xf32, #tpu.memory_space<vmem>>, vector<1x1x4x1xf32>
    %66 = vector.shape_cast %65 : vector<1x1x4x1xf32> to vector<4x1xf32>
    %67 = vector.shape_cast %64 : vector<4x1xf32> to vector<1x1x4x1xf32>
    tpu.vector_store %arg4[%c0_31, %c0_32, %c0_33, %c3], %67 {strides = array<i32>} : memref<1x1x4x8xf32, #tpu.memory_space<vmem>>, vector<1x1x4x1xf32>,
    %cst_34 = arith.constant dense<0.000000e+00> : vector<4xf32>
    %68 = vector.multi_reduction <add>, %32, %cst_34 [1] : vector<4x256xf32> to vector<4xf32>
    %69 = vector.shape_cast %68 : vector<4xf32> to vector<4x1xf32>
    %c0_35 = arith.constant 0 : index
    %c0_36 = arith.constant 0 : index
    %c0_37 = arith.constant 0 : index
    %c4 = arith.constant 4 : index
    %70 = vector.load %arg4[%c0_35, %c0_36, %c0_37, %c4] : memref<1x1x4x8xf32, #tpu.memory_space<vmem>>, vector<1x1x4x1xf32>
    %71 = vector.shape_cast %70 : vector<1x1x4x1xf32> to vector<4x1xf32>
    %72 = vector.shape_cast %69 : vector<4x1xf32> to vector<1x1x4x1xf32>
    tpu.vector_store %arg4[%c0_35, %c0_36, %c0_37, %c4], %72 {strides = array<i32>} : memref<1x1x4x8xf32, #tpu.memory_space<vmem>>, vector<1x1x4x1xf32>,
    %cst_38 = arith.constant 0.000000e+00 : f32
    %73 = vector.broadcast %cst_38 : f32 to vector<4x1xf32>
    %74 = vector.broadcast %47 : f32 to vector<4x1xf32>
    %75 = arith.addf %73, %74 : vector<4x1xf32>
    %c0_39 = arith.constant 0 : index
    %c0_40 = arith.constant 0 : index
    %c0_41 = arith.constant 0 : index
    %c5 = arith.constant 5 : index
    %76 = vector.load %arg4[%c0_39, %c0_40, %c0_41, %c5] : memref<1x1x4x8xf32, #tpu.memory_space<vmem>>, vector<1x1x4x1xf32>
    %77 = vector.shape_cast %76 : vector<1x1x4x1xf32> to vector<4x1xf32>
    %78 = vector.shape_cast %75 : vector<4x1xf32> to vector<1x1x4x1xf32>
    tpu.vector_store %arg4[%c0_39, %c0_40, %c0_41, %c5], %78 {strides = array<i32>} : memref<1x1x4x8xf32, #tpu.memory_space<vmem>>, vector<1x1x4x1xf32>,
    %cst_42 = arith.constant 0.000000e+00 : f32
    %79 = vector.broadcast %cst_42 : f32 to vector<4x2xf32>
    %c0_43 = arith.constant 0 : index
    %c0_44 = arith.constant 0 : index
    %c0_45 = arith.constant 0 : index
    %c6 = arith.constant 6 : index
    %80 = vector.load %arg4[%c0_43, %c0_44, %c0_45, %c6] : memref<1x1x4x8xf32, #tpu.memory_space<vmem>>, vector<1x1x4x2xf32>
    %81 = vector.shape_cast %80 : vector<1x1x4x2xf32> to vector<4x2xf32>
    %82 = vector.shape_cast %79 : vector<4x2xf32> to vector<1x1x4x2xf32>
    tpu.vector_store %arg4[%c0_43, %c0_44, %c0_45, %c6], %82 {strides = array<i32>} : memref<1x1x4x8xf32, #tpu.memory_space<vmem>>, vector<1x1x4x2xf32>,
    return
  }
  func.func @transform_0(%arg0: i32, %arg1: i32) -> (i32, i32, i32) {
    %c0_i32 = arith.constant 0 : i32
    %c0_i32_0 = arith.constant 0 : i32
    return %arg0, %c0_i32, %arg1 : i32, i32, i32
  }
  func.func @transform_1(%arg0: i32, %arg1: i32) -> (i32, i32, i32) {
    %c0_i32 = arith.constant 0 : i32
    %c0_i32_0 = arith.constant 0 : i32
    return %arg0, %c0_i32, %arg1 : i32, i32, i32
  }
  func.func @transform_2(%arg0: i32, %arg1: i32) -> (i32, i32, i32, i32) {
    %c0_i32 = arith.constant 0 : i32
    %c0_i32_0 = arith.constant 0 : i32
    %c0_i32_1 = arith.constant 0 : i32
    return %arg0, %arg1, %c0_i32, %c0_i32_0 : i32, i32, i32, i32
  }
}

</mosaic_0001>

<llo_original>
// kernel: tpu_custom_call.1
$region0: #{tpu_custom_call.1}
  #allocation0 [shape = 'u32[]', space=smem, size = 0x4, offset = 0x4, fixed_abs, tag = 'smem constant byte address 0x4 - core index']
  #allocation1 [shape = 'u32[144,128]{1,0:T(1,128)}', space=vmem, size = 0x12000, scoped, tag = 'internal scratch']
  %s0 = inlined_call_operand.hbm [shape: f32[2,4,256], index: 0, kind: input, shape index: {}]
  %s1 = inlined_call_operand.hbm [shape: f32[2,4,256], index: 1, kind: input, shape index: {}]
  %s2 = inlined_call_operand.hbm [shape: f32[2,1,4,8], index: 2, kind: output, shape index: {}]
  %s3 = sld [smem:[#allocation0]]
  $region49: #{tpu_custom_call.1} parent=0
    _
  %s5 = ssub.s32 1, %s3
  %s6 = scalar_select 0, %s5, %s3
  $region1: #{tpu_custom_call.1} parent=0
    #allocation2 [shape = 'u8[8192]{0}', space=vmem, size = 0x2000, scoped, tag = 'input window, operand 0']
    #allocation3 [shape = 's32[2]{0}', space=sflag, size = 0x8, scoped, tag = 'scoped memory for tpu_custom_call.1']
    #allocation4 [shape = 's32[2]{0}', space=sflag, size = 0x8, scoped, tag = 'scoped memory for tpu_custom_call.1']
    #allocation5 [shape = 'u8[8192]{0}', space=vmem, size = 0x2000, scoped, tag = 'input window, operand 1']
    #allocation6 [shape = 's32[2]{0}', space=sflag, size = 0x8, scoped, tag = 'scoped memory for tpu_custom_call.1']
    #allocation7 [shape = 'u8[4096]{0}', space=vmem, size = 0x1000, scoped, tag = 'output window, operand 0']
    %7 = vsyncpa [#allocation3], 0
    %s8 = scalar_lea.sflag [#allocation3], 1
    %9 = vsyncpa %s8, 0
    %10 = vsyncpa [#allocation6], 0
    %s11 = scalar_lea.sflag [#allocation6], 1
    %12 = vsyncpa %s11, 0
    %13 = vsyncpa [#allocation4], 0
    %s14 = scalar_lea.sflag [#allocation4], 1
    %15 = vsyncpa %s14, 0
    loop: start=0, step=1, limit=4
    $region2: #{tpu_custom_call.1} parent=1 // loop_pre_header
      _
    $region3: #{tpu_custom_call.1} parent=1 // loop_header
      %s17 = sphi 0, %s21
      %p18 = scmp.ge.s32.totalorder %s17, 4
      %s24 = sphi 0, %s36
      %s25 = sphi 0, %s32
      %s26 = sphi 0, %s24
      %s27 = sphi 0, %s25
      %s28 = sphi 0, %s26
      %s29 = sphi 0, %s27
      %s41 = sphi 0, %s43
      %s44 = sphi 0, %s41
      %s45 = sphi 0, %s44
      %s61 = sphi 0, %s45
      %s69 = sphi 0, %s71
      %s72 = sphi 0, %s69
      %s73 = sphi 0, %s72
      %s89 = sphi 0, %s73
      %s97 = sphi 0, %s99
      %s100 = sphi 0, %s97
      %s101 = sphi 0, %s100
      %s117 = sphi 0, %s101
    $region4: #{tpu_custom_call.1} parent=1 // loop_header_branch
      %20 = sbr.rel (%p18) target = $region8
    $region5: #{tpu_custom_call.1} parent=1 // loop_body
      %s22 = ssub.s32 %s17, 1
      %s23 = ssub.s32 %s17, 2
      %s30 = sadd.s32 1, %s25
      %p31 = scmp.ge.s32.totalorder %s30, 1
      %s32 = scalar_select %p31, 0, %s30
      %s33 = sadd.s32 1, %s24
      %s34 = scalar_select %p31, %s33, %s24
      %p35 = scmp.ge.s32.totalorder %s34, 2
      %s36 = scalar_select %p35, 0, %s34
      %s37 = ssub.s32 %s24, %s36
      %s38 = ssub.s32 %s25, %s32
      %s39 = sor.u32 %s37, %s38
      %p40 = scmp.eq.s32.totalorder %s39, 0
      %s42 = sadd.s32 %s41, 1
      %s43 = scalar_select %p40, %s41, %s42
      %p46 = pneg %p40
      %p47 = scmp.eq.s32.totalorder %s17, 1
      %p48 = por %p46, %p47
      %p49 = scmp.ne.s32.totalorder %s41, %s44
      %p50 = scmp.eq.s32.totalorder %s17, 0
      %p51 = por %p49, %p50
      %p52 = scmp.ne.s32.totalorder %s41, %s44
      %p53 = scmp.eq.s32.totalorder %s22, 1
      %p54 = por %p52, %p53
      %p55 = scmp.ne.s32.totalorder %s44, %s45
      %p56 = scmp.eq.s32.totalorder %s22, 0
      %p57 = por %p55, %p56
      %p58 = scmp.ne.s32.totalorder %s44, %s45
      %p59 = scmp.eq.s32.totalorder %s23, 1
      %p60 = por %p58, %p59
      %p62 = scmp.ne.s32.totalorder %s45, %s61
      %p63 = scmp.eq.s32.totalorder %s23, 0
      %p64 = por %p62, %p63
      %s65 = ssub.s32 %s24, %s36
      %s66 = ssub.s32 %s25, %s32
      %s67 = sor.u32 %s65, %s66
      %p68 = scmp.eq.s32.totalorder %s67, 0
      %s70 = sadd.s32 %s69, 1
      %s71 = scalar_select %p68, %s69, %s70
      %p74 = pneg %p68
      %p75 = scmp.eq.s32.totalorder %s17, 1
      %p76 = por %p74, %p75
      %p77 = scmp.ne.s32.totalorder %s69, %s72
      %p78 = scmp.eq.s32.totalorder %s17, 0
      %p79 = por %p77, %p78
      %p80 = scmp.ne.s32.totalorder %s69, %s72
      %p81 = scmp.eq.s32.totalorder %s22, 1
      %p82 = por %p80, %p81
      %p83 = scmp.ne.s32.totalorder %s72, %s73
      %p84 = scmp.eq.s32.totalorder %s22, 0
      %p85 = por %p83, %p84
      %p86 = scmp.ne.s32.totalorder %s72, %s73
      %p87 = scmp.eq.s32.totalorder %s23, 1
      %p88 = por %p86, %p87
      %p90 = scmp.ne.s32.totalorder %s73, %s89
      %p91 = scmp.eq.s32.totalorder %s23, 0
      %p92 = por %p90, %p91
      %s93 = ssub.s32 %s24, %s36
      %s94 = ssub.s32 %s25, %s32
      %s95 = sor.u32 %s93, %s94
      %p96 = scmp.eq.s32.totalorder %s95, 0
      %s98 = sadd.s32 %s97, 1
      %s99 = scalar_select %p96, %s97, %s98
      %p102 = pneg %p96
      %p103 = scmp.eq.s32.totalorder %s17, 1
      %p104 = por %p102, %p103
      %p105 = scmp.ne.s32.totalorder %s97, %s100
      %p106 = scmp.eq.s32.totalorder %s17, 0
      %p107 = por %p105, %p106
      %p108 = scmp.ne.s32.totalorder %s97, %s100
      %p109 = scmp.eq.s32.totalorder %s22, 1
      %p110 = por %p108, %p109
      %p111 = scmp.ne.s32.totalorder %s100, %s101
      %p112 = scmp.eq.s32.totalorder %s22, 0
      %p113 = por %p111, %p112
      %p114 = scmp.ne.s32.totalorder %s100, %s101
      %p115 = scmp.eq.s32.totalorder %s23, 1
      %p116 = por %p114, %p115
      %p118 = scmp.ne.s32.totalorder %s101, %s117
      %p119 = scmp.eq.s32.totalorder %s23, 0
      %p120 = por %p118, %p119
      %p121 = scmp.le.s32.totalorder 1, %s17
      %p122 = scmp.lt.s32.totalorder %s17, 3
      %p123 = pnand %p121, %p122
      %p124 = pneg %p123
      // Predicated region
      $region9: #{tpu_custom_call.1} parent=5 // pred_check
        _
      $region10: #{tpu_custom_call.1} parent=5 // pred_check_branch
        %126 = sbr.rel (%p123) target = $region12
      $region11: #{tpu_custom_call.1} parent=5 // pred_region
        %s127 = ssub.s32 %s17, 1
      $region12: #{tpu_custom_call.1} parent=5 // pred_fallthru
        _
      %p128 = scmp.lt.s32.totalorder %s17, 2
      // Predicated region
      $region13: #{tpu_custom_call.1} parent=5 // pred_check
        %p129 = pneg %p128
      $region14: #{tpu_custom_call.1} parent=5 // pred_check_branch
        %131 = sbr.rel (%p129) target = $region16
      $region15: #{tpu_custom_call.1} parent=5 // pred_region
        // Predicated region
        $region17: #{tpu_custom_call.1} parent=15 // pred_check
          %p132 = pneg %p51
        $region18: #{tpu_custom_call.1} parent=15 // pred_check_branch
          %134 = sbr.rel (%p132) target = $region20
        $region19: #{tpu_custom_call.1} parent=15 // pred_region
          %s135 = sand.u32 %s41, 1
          %s136 = scalar_lea.sflag [#allocation3], %s135
          %s137 = sand.u32 %s41, 1
          %s138 = smul.addr %s137, 8
          %s139 = scalar_lea.vmem [#allocation2], %s138
          %s140 = smul.u32 2, %s25
          %s142 = ssub.s32 128, 128
          %143 = vsyncadd %s136, %s142
          %s144 = smul.addr %s24, 2
          %s145 = sadd.s32 %s140, %s144
          %s146 = smul.addr %s145, 64
          %s147 = scalar_lea.hbm %s0, %s146
          %s149 = sshll.u32 %s139, 4
          %s150 = int_to_ptr.vmem [resolvable:$true] %s149
          %152 = dma.hbm_to_vmem [thread:$0]  %s147, 128, %s150, %s136
        $region20: #{tpu_custom_call.1} parent=15 // pred_fallthru
          _
        // Predicated region
        $region21: #{tpu_custom_call.1} parent=15 // pred_check
          %p153 = pneg %p79
        $region22: #{tpu_custom_call.1} parent=15 // pred_check_branch
          %155 = sbr.rel (%p153) target = $region24
        $region23: #{tpu_custom_call.1} parent=15 // pred_region
          %s156 = sand.u32 %s69, 1
          %s157 = scalar_lea.sflag [#allocation6], %s156
          %s158 = sand.u32 %s69, 1
          %s159 = smul.addr %s158, 8
          %s160 = scalar_lea.vmem [#allocation5], %s159
          %s161 = smul.u32 2, %s25
          %s163 = ssub.s32 128, 128
          %164 = vsyncadd %s157, %s163
          %s165 = smul.addr %s24, 2
          %s166 = sadd.s32 %s161, %s165
          %s167 = smul.addr %s166, 64
          %s168 = scalar_lea.hbm %s1, %s167
          %s170 = sshll.u32 %s160, 4
          %s171 = int_to_ptr.vmem [resolvable:$true] %s170
          %173 = dma.hbm_to_vmem [thread:$0]  %s168, 128, %s171, %s157
        $region24: #{tpu_custom_call.1} parent=15 // pred_fallthru
          _
      $region16: #{tpu_custom_call.1} parent=5 // pred_fallthru
        _
      %p174 = scmp.le.s32.totalorder 1, %s17
      %p175 = scmp.lt.s32.totalorder %s17, 3
      %p176 = pnand %p174, %p175
      %p177 = pneg %p176
      // Predicated region
      $region25: #{tpu_custom_call.1} parent=5 // pred_check
        _
      $region26: #{tpu_custom_call.1} parent=5 // pred_check_branch
        %179 = sbr.rel (%p176) target = $region28
      $region27: #{tpu_custom_call.1} parent=5 // pred_region
        %s180 = ssub.s32 %s17, 1
        %s181 = sand.u32 %s44, 1
        %s182 = scalar_lea.sflag [#allocation3], %s181
        %s183 = sand.u32 %s44, 1
        %s184 = smul.addr %s183, 8
        %s185 = scalar_lea.vmem [#allocation2], %s184
        // Predicated region
        $region29: #{tpu_custom_call.1} parent=27 // pred_check
          %p186 = pneg %p57
        $region30: #{tpu_custom_call.1} parent=27 // pred_check_branch
          %188 = sbr.rel (%p186) target = $region32
        $region31: #{tpu_custom_call.1} parent=27 // pred_region
          %189 = dma.done %s182, 128
        $region32: #{tpu_custom_call.1} parent=27 // pred_fallthru
          _
        %s190 = sand.u32 %s72, 1
        %s191 = scalar_lea.sflag [#allocation6], %s190
        %s192 = sand.u32 %s72, 1
        %s193 = smul.addr %s192, 8
        %s194 = scalar_lea.vmem [#allocation5], %s193
        // Predicated region
        $region33: #{tpu_custom_call.1} parent=27 // pred_check
          %p195 = pneg %p85
        $region34: #{tpu_custom_call.1} parent=27 // pred_check_branch
          %197 = sbr.rel (%p195) target = $region36
        $region35: #{tpu_custom_call.1} parent=27 // pred_region
          %198 = dma.done %s191, 128
        $region36: #{tpu_custom_call.1} parent=27 // pred_fallthru
          _
        %s199 = sand.u32 %s44, 1
        %s200 = scalar_lea.sflag [#allocation3], %s199
        %s201 = sand.u32 %s44, 1
        %s202 = smul.addr %s201, 8
        %s203 = scalar_lea.vmem [#allocation2], %s202
        %p204 = pneg %p57
        %p205 = pneg %p54
        %s206 = sand.u32 %s72, 1
        %s207 = scalar_lea.sflag [#allocation6], %s206
        %s208 = sand.u32 %s72, 1
        %s209 = smul.addr %s208, 8
        %s210 = scalar_lea.vmem [#allocation5], %s209
        %p211 = pneg %p85
        %p212 = pneg %p82
        %p213 = pneg %p113
        %p214 = pneg %p110
        %s215 = sand.u32 %s100, 1
        %s216 = scalar_lea.sflag [#allocation4], %s215
        %s217 = sand.u32 %s100, 1
        %s218 = smul.addr %s217, 4
        %s219 = scalar_lea.vmem [#allocation7], %s218
        %s220 = smul.u32 2, %s27
        %s221 = smul.u32 2, %s27
        %v222 = vld [vmem:[%s185] sm:$0xff]
        %v223 = vld [vmem:[%s194] sm:$0xff]
        %v225 = vcombine.high %v222, %v222
        %vm227 = vcmask 1043456
        %v228 = vsel %vm227, %v222, -inf
        %v229 = vrot.slane %v228, 4
        %v230 = vmax.f32 %v228, %v229
        %v231 = vrot.slane %v230, 2
        %v232 = vmax.f32 %v230, %v231
        %v233 = vrot.slane %v232, 1
        %v234 = vmax.f32 %v232, %v233
        %v235 = vsel %vm227, %v225, -inf
        %v236 = vrot.slane %v235, 4
        %v237 = vmax.f32 %v235, %v236
        %v238 = vrot.slane %v237, 2
        %v239 = vmax.f32 %v237, %v238
        %v240 = vrot.slane %v239, 1
        %v241 = vmax.f32 %v239, %v240
        %v244 = vcombine.low %v234, %v241
        %v246 = vsub.f32 %v222, %v244
        %v247 = vmul.f32 %v246, 1.442695
        %v248 = vpow.pop %v247
        %v250 = vcombine.high %v248, %v248
        %v252 = vsel %vm227, %v248, 0.0
        %v253 = vrot.slane %v252, 4
        %v254 = vadd.f32 %v252, %v253
        %v255 = vrot.slane %v254, 2
        %v256 = vadd.f32 %v254, %v255
        %v257 = vrot.slane %v256, 1
        %v258 = vadd.f32 %v256, %v257
        %v259 = vsel %vm227, %v250, 0.0
        %v260 = vrot.slane %v259, 4
        %v261 = vadd.f32 %v259, %v260
        %v262 = vrot.slane %v261, 2
        %v263 = vadd.f32 %v261, %v262
        %v264 = vrot.slane %v263, 1
        %v265 = vadd.f32 %v263, %v264
        %v266 = vrcp.pop %v258
        %v267 = vmul.f32 1.0, %v266
        %v268 = vrcp.pop %v265
        %v269 = vmul.f32 1.0, %v268
        %v272 = vcombine.low %v267, %v269
        %v274 = vmul.f32 %v248, %v272
        %v275 = vsub.f32 %v274, 0.25
        %v277 = vcombine.high %v223, %v223
        %v279 = vsel %vm227, %v223, -inf
        %v280 = vrot.slane %v279, 4
        %v281 = vmax.f32 %v279, %v280
        %v282 = vrot.slane %v281, 2
        %v283 = vmax.f32 %v281, %v282
        %v284 = vrot.slane %v283, 1
        %v285 = vmax.f32 %v283, %v284
        %v286 = vsel %vm227, %v277, -inf
        %v287 = vrot.slane %v286, 4
        %v288 = vmax.f32 %v286, %v287
        %v289 = vrot.slane %v288, 2
        %v290 = vmax.f32 %v288, %v289
        %v291 = vrot.slane %v290, 1
        %v292 = vmax.f32 %v290, %v291
        %v295 = vcombine.low %v285, %v292
        %v297 = vsub.f32 %v223, %v295
        %v298 = vmul.f32 %v297, 1.442695
        %v299 = vpow.pop %v298
        %v301 = vcombine.high %v299, %v299
        %v303 = vsel %vm227, %v299, 0.0
        %v304 = vrot.slane %v303, 4
        %v305 = vadd.f32 %v303, %v304
        %v306 = vrot.slane %v305, 2
        %v307 = vadd.f32 %v305, %v306
        %v308 = vrot.slane %v307, 1
        %v309 = vadd.f32 %v307, %v308
        %v310 = vsel %vm227, %v301, 0.0
        %v311 = vrot.slane %v310, 4
        %v312 = vadd.f32 %v310, %v311
        %v313 = vrot.slane %v312, 2
        %v314 = vadd.f32 %v312, %v313
        %v315 = vrot.slane %v314, 1
        %v316 = vadd.f32 %v314, %v315
        %v317 = vrcp.pop %v309
        %v318 = vmul.f32 1.0, %v317
        %v319 = vrcp.pop %v316
        %v320 = vmul.f32 1.0, %v319
        %v323 = vcombine.low %v318, %v320
        %v325 = vmul.f32 %v299, %v323
        %v326 = vsub.f32 %v325, 0.25
        %v327 = vmul.f32 %v275, %v275
        %v328 = vmul.f32 %v326, %v326
        %v329 = vmul.f32 %v275, %v326
        %v331 = vcombine.high %v329, %v329
        %v333 = vsel %vm227, %v329, 0.0
        %v334 = vrot.slane %v333, 4
        %v335 = vadd.f32 %v333, %v334
        %v336 = vrot.slane %v335, 2
        %v337 = vadd.f32 %v335, %v336
        %v338 = vrot.slane %v337, 1
        %v339 = vadd.f32 %v337, %v338
        %v340 = vsel %vm227, %v331, 0.0
        %v341 = vrot.slane %v340, 4
        %v342 = vadd.f32 %v340, %v341
        %v343 = vrot.slane %v342, 2
        %v344 = vadd.f32 %v342, %v343
        %v345 = vrot.slane %v344, 1
        %v346 = vadd.f32 %v344, %v345
        %v348 = vcombine.high %v327, %v327
        %v350 = vsel %vm227, %v327, 0.0
        %v351 = vrot.slane %v350, 4
        %v352 = vadd.f32 %v350, %v351
        %v353 = vrot.slane %v352, 2
        %v354 = vadd.f32 %v352, %v353
        %v355 = vrot.slane %v354, 1
        %v356 = vadd.f32 %v354, %v355
        %v357 = vsel %vm227, %v348, 0.0
        %v358 = vrot.slane %v357, 4
        %v359 = vadd.f32 %v357, %v358
        %v360 = vrot.slane %v359, 2
        %v361 = vadd.f32 %v359, %v360
        %v362 = vrot.slane %v361, 1
        %v363 = vadd.f32 %v361, %v362
        %v365 = vcombine.high %v328, %v328
        %v367 = vsel %vm227, %v328, 0.0
        %v368 = vrot.slane %v367, 4
        %v369 = vadd.f32 %v367, %v368
        %v370 = vrot.slane %v369, 2
        %v371 = vadd.f32 %v369, %v370
        %v372 = vrot.slane %v371, 1
        %v373 = vadd.f32 %v371, %v372
        %v374 = vsel %vm227, %v365, 0.0
        %v375 = vrot.slane %v374, 4
        %v376 = vadd.f32 %v374, %v375
        %v377 = vrot.slane %v376, 2
        %v378 = vadd.f32 %v376, %v377
        %v379 = vrot.slane %v378, 1
        %v380 = vadd.f32 %v378, %v379
        %v381 = vmul.f32 %v356, %v373
        %v382 = vmul.f32 %v363, %v380
        %v383 = vrsqrt.pop %v381
        %v384 = vmul.f32 %v381, %v383
        %vm385 = vcmp.eq.f32.partialorder %v381, inf
        %v386 = vsel %vm385, %v381, %v384
        %vm387 = vcmp.eq.f32.partialorder %v381, 0.0
        %v388 = vand.u32 %v381, 2147483648
        %v389 = vsel %vm387, %v388, %v386
        %v390 = vrsqrt.pop %v382
        %v391 = vmul.f32 %v382, %v390
        %vm392 = vcmp.eq.f32.partialorder %v382, inf
        %v393 = vsel %vm392, %v382, %v391
        %vm394 = vcmp.eq.f32.partialorder %v382, 0.0
        %v395 = vand.u32 %v382, 2147483648
        %v396 = vsel %vm394, %v395, %v393
        %v397 = vadd.f32 %v389, 1e-08
        %v398 = vadd.f32 %v396, 1e-08
        %v399 = vrcp.pop %v397
        %v400 = vmul.f32 %v339, %v399
        %v401 = vrcp.pop %v398
        %v402 = vmul.f32 %v346, %v401
        %vm403 = vcmask 1040384
        %v404 = vsel %vm403, %v400, 0.0
        %v405 = vsel %vm403, %v402, 0.0
        %v406 = vadd.f32 %v404, %v405
        %407 = vadd.xlane.f32.xlu0 %v406
        %v408 = vpop.xlane.xlu0 %407
        %v409 = vrot.slane %v408, 4
        %v410 = vadd.f32 %v408, %v409
        %v411 = vrot.slane %v410, 2
        %v412 = vadd.f32 %v410, %v411
        %v413 = vrot.slane %v412, 1
        %v414 = vadd.f32 %v412, %v413
        %s415 = vtos %v414
        %v417 = vcombine.high %v275, %v275
        %v419 = vsel %vm227, %v275, 0.0
        %v420 = vsel %vm227, %v417, 0.0
        %v421 = vadd.f32 %v419, %v420
        %422 = vadd.xlane.f32.xlu0 %v421
        %v423 = vpop.xlane.xlu0 %422
        %vm424 = vcmask 3072
        %425 = vst.msk [vmem:[%s219] sm:$0xf] %vm424, %v423
        %v427 = vcombine.high %v326, %v326
        %v429 = vsel %vm227, %v326, 0.0
        %v430 = vsel %vm227, %v427, 0.0
        %v431 = vadd.f32 %v429, %v430
        %432 = vadd.xlane.f32.xlu0 %v431
        %v433 = vpop.xlane.xlu0 %432
        %vm434 = vcmask 11272
        %435 = vst.msk [vmem:[%s219] sm:$0xf] %vm434, %v433
        %v436 = vadd.f32 %v350, %v357
        %437 = vadd.xlane.f32.xlu0 %v436
        %v438 = vpop.xlane.xlu0 %437
        %vm439 = vcmask 19472
        %440 = vst.msk [vmem:[%s219] sm:$0xf] %vm439, %v438
        %v441 = vadd.f32 %v367, %v374
        %442 = vadd.xlane.f32.xlu0 %v441
        %v443 = vpop.xlane.xlu0 %442
        %vm444 = vcmask 27672
        %445 = vst.msk [vmem:[%s219] sm:$0xf] %vm444, %v443
        %v446 = vadd.f32 %v333, %v340
        %447 = vadd.xlane.f32.xlu0 %v446
        %v448 = vpop.xlane.xlu0 %447
        %vm449 = vcmask 35872
        %450 = vst.msk [vmem:[%s219] sm:$0xf] %vm449, %v448
        %v451 = vstv %s415
        %v452 = vadd.f32 %v451, 0.0
        %vm453 = vcmask 44072
        %454 = vst.msk [vmem:[%s219] sm:$0xf] %vm453, %v452
        %vm455 = vcmask 60464
        %456 = vst.msk [vmem:[%s219] sm:$0xf] %vm455, 0.0
        %s457 = sand.u32 %s100, 1
        %s458 = scalar_lea.sflag [#allocation4], %s457
        %s459 = sand.u32 %s100, 1
        %s460 = smul.addr %s459, 4
        %s461 = scalar_lea.vmem [#allocation7], %s460
        // Predicated region
        $region37: #{tpu_custom_call.1} parent=27 // pred_check
          %p462 = pneg %p110
        $region38: #{tpu_custom_call.1} parent=27 // pred_check_branch
          %464 = sbr.rel (%p462) target = $region40
        $region39: #{tpu_custom_call.1} parent=27 // pred_region
          %s466 = ssub.s32 64, 64
          %467 = vsyncadd %s458, %s466
          %s468 = sadd.s32 %s27, %s26
          %s469 = smul.addr %s468, 64
          %s470 = scalar_lea.hbm %s2, %s469
          %s472 = sshll.u32 %s461, 4
          %s473 = int_to_ptr.vmem [resolvable:$true] %s472
          %475 = dma.vmem_to_hbm [thread:$0]  %s473, 64, %s470, %s458
        $region40: #{tpu_custom_call.1} parent=27 // pred_fallthru
          _
      $region28: #{tpu_custom_call.1} parent=5 // pred_fallthru
        _
      %p476 = scmp.le.s32.totalorder 2, %s17
      // Predicated region
      $region41: #{tpu_custom_call.1} parent=5 // pred_check
        %p477 = pneg %p476
      $region42: #{tpu_custom_call.1} parent=5 // pred_check_branch
        %479 = sbr.rel (%p477) target = $region44
      $region43: #{tpu_custom_call.1} parent=5 // pred_region
        %s480 = ssub.s32 %s17, 2
        // Predicated region
        $region45: #{tpu_custom_call.1} parent=43 // pred_check
          %p481 = pneg %p116
        $region46: #{tpu_custom_call.1} parent=43 // pred_check_branch
          %483 = sbr.rel (%p481) target = $region48
        $region47: #{tpu_custom_call.1} parent=43 // pred_region
          %s484 = sand.u32 %s101, 1
          %s485 = scalar_lea.sflag [#allocation4], %s484
          %s486 = sand.u32 %s101, 1
          %s487 = smul.addr %s486, 4
          %s488 = scalar_lea.vmem [#allocation7], %s487
          %489 = dma.done %s485, 64
        $region48: #{tpu_custom_call.1} parent=43 // pred_fallthru
          _
      $region44: #{tpu_custom_call.1} parent=5 // pred_fallthru
        _
    $region6: #{tpu_custom_call.1} parent=1 // loop_footer
      %s21 = sadd.s32 1, %s17
    $region7: #{tpu_custom_call.1} parent=1 // loop_footer_branch
      %16 = sbr.rel target = $region3
    $region8: #{tpu_custom_call.1} parent=1 // loop_exit
      _
    %490 = vsyncpa [#allocation3], 1
    %s491 = scalar_lea.sflag [#allocation3], 1
    %492 = vsyncpa %s491, 1
    %493 = vsyncpa [#allocation6], 1
    %s494 = scalar_lea.sflag [#allocation6], 1
    %495 = vsyncpa %s494, 1
    %496 = vsyncpa [#allocation4], 1
    %s497 = scalar_lea.sflag [#allocation4], 1
    %498 = vsyncpa %s497, 1

</llo_original>
